<compile_context>
chip_gen: v7x
topology: tpu7x:2x2x1
jax: 0.10.0
libtpu: 0.0.40
codegen_flags: <defaults>
</compile_context>

<pallas_src>
import jax
import jax.numpy as jnp
from jax.experimental import pallas as pl
from jax.experimental.pallas import tpu as pltpu


_TARGET_IN_BLOCK_BYTES = 6 << 20      # budget for one (TM, HW)/(TM, TK) input block
_VMEM_LIMIT_BYTES = 48 << 20          # > v5e(16)/v6e,v7x(32) scoped defaults, < v7x 64 MiB physical


def _sublane_align(itemsize: int) -> int:
    # f32 -> 8, bf16 -> 16, int8/fp8 -> 32 (sub-32-bit dtypes pack along sublanes).
    return max(8, 32 // max(1, itemsize))


def _row_tile(num_rows: int, row_bytes: int, align: int, budget: int) -> int:
    """Largest align-multiple row tile fitting `budget`, capped near num_rows/2 so the
    'parallel' row axis yields >= 2 blocks (keeps both v7x TensorCores busy)."""
    if num_rows <= align:
        return num_rows                       # block == full dim (always legal)
    tm = (budget // max(1, row_bytes)) // align * align
    tm = max(align, tm)
    half = -(-num_rows // 2)                  # ceil(R / 2)
    cap = -(-half // align) * align           # rounded up to sublane alignment
    return max(align, min(tm, cap))


def _lane_tile(hw: int, itemsize: int, align: int, budget: int) -> int:
    """Largest multiple-of-128 divisor of hw whose (align x TK) slab fits budget."""
    m = hw // 128
    d_max = max(1, budget // (align * 128 * itemsize))
    for d in range(min(d_max, m), 0, -1):
        if m % d == 0:
            return 128 * d
    return 128


def _make_dup_rows_kernel(hw: int, aligned: bool):
    def kernel(x_ref, o_ref):
        x = x_ref[...]
        if aligned:
            # Both stores start at lane offsets that are multiples of 128 ->
            # fully unmasked, lane-dense vst, no temporaries.
            o_ref[:, pl.ds(0, hw)] = x
            o_ref[:, pl.ds(hw, hw)] = x
        else:
            # hw not 128-aligned: build the duplicated row in vregs (XLU shifts
            # are free filler under the DMA-bound roofline) so the store is one
            # lane-dense full-block write instead of a misaligned masked store.
            o_ref[...] = jnp.concatenate([x, x], axis=-1)
    return kernel


def _copy_tile_kernel(x_ref, o_ref):
    o_ref[...] = x_ref[...]


def concat_self_dim2(x: jax.Array) -> jax.Array:
    """Equivalent of torch.concat([x, x], dim=2) for a 4-D NCHW tensor."""
    N, C, H, W = x.shape
    R, HW = N * C, H * W
    itemsize = jnp.dtype(x.dtype).itemsize
    align = _sublane_align(itemsize)
    x2 = x.reshape(R, HW)                      # free, contiguous, lane-dense rows

    cost = pl.CostEstimate(flops=0, transcendentals=0,
                           bytes_accessed=3 * R * HW * itemsize)

    hw_aligned = (HW % 128) == 0
    need_lane_tiling = hw_aligned and (align * HW * itemsize > _TARGET_IN_BLOCK_BYTES)

    if need_lane_tiling:
        # Huge rows: tile the lane dimension too so blocks stay within budget.
        TK = _lane_tile(HW, itemsize, align, _TARGET_IN_BLOCK_BYTES)
        nj = HW // TK
        TM = _row_tile(R, TK * itemsize, align, _TARGET_IN_BLOCK_BYTES)
        out2 = pl.pallas_call(
            _copy_tile_kernel,
            out_shape=jax.ShapeDtypeStruct((R, 2 * HW), x.dtype),
            grid_spec=pltpu.PrefetchScalarGridSpec(
                num_scalar_prefetch=0,
                grid=(pl.cdiv(R, TM), nj, 2),
                # Copy axis r is last: input block index is constant across r,
                # so the pipeliner does not re-DMA the input tile.
                in_specs=[pl.BlockSpec((TM, TK), lambda i, j, r: (i, j))],
                out_specs=pl.BlockSpec((TM, TK), lambda i, j, r: (i, r * nj + j)),
            ),
            compiler_params=pltpu.CompilerParams(
                dimension_semantics=("parallel", "parallel", "arbitrary"),
                vmem_limit_bytes=_VMEM_LIMIT_BYTES,
            ),
            cost_estimate=cost,
        )(x2)
    else:
        # Main path: 1-D grid over row tiles, copy axis folded into the output
        # block -> one read + one (2x-wide) write per grid step.
        # TODO(synk): if HW % 128 != 0 AND a single row exceeds the VMEM budget,
        # the block can still be large (lane-tiling a non-128-divisible row is
        # not expressible with rectangular BlockSpecs).
        TM = _row_tile(R, HW * itemsize, align, _TARGET_IN_BLOCK_BYTES)
        out2 = pl.pallas_call(
            _make_dup_rows_kernel(HW, hw_aligned),
            out_shape=jax.ShapeDtypeStruct((R, 2 * HW), x.dtype),
            grid_spec=pltpu.PrefetchScalarGridSpec(
                num_scalar_prefetch=0,
                grid=(pl.cdiv(R, TM),),
                in_specs=[pl.BlockSpec((TM, HW), lambda i: (i, 0))],
                out_specs=pl.BlockSpec((TM, 2 * HW), lambda i: (i, 0)),
            ),
            compiler_params=pltpu.CompilerParams(
                dimension_semantics=("parallel",),
                vmem_limit_bytes=_VMEM_LIMIT_BYTES,
            ),
            cost_estimate=cost,
        )(x2)

    return out2.reshape(N, C, 2 * H, W)


if __name__ == "__main__":
    key = jax.random.PRNGKey(0)
    # Small NCHW tensor; H*W = 128 so the lane-dense folded path is exercised.
    x = jax.random.normal(key, (2, 4, 8, 16), dtype=jnp.float32)

    out = concat_self_dim2(x)
    out = jax.block_until_ready(out)

    ref = jnp.concatenate([x, x], axis=2)     # same semantics as torch.concat dim=2
    assert out.shape == (2, 4, 16, 16), out.shape
    assert out.dtype == x.dtype
    assert jnp.array_equal(out, ref)

    print("KERNEL_OK")
</pallas_src>

<mosaic_0001>
module attributes {stable_mosaic.version = 11 : i64} {
  func.func @kernel(%arg0: i32, %arg1: memref<8x128xf32, #tpu.memory_space<vmem>>, %arg2: memref<8x256xf32, #tpu.memory_space<vmem>>) attributes {dimension_semantics = [#tpu.dimension_semantics<parallel>], iteration_bounds = array<i64: 1>, scalar_prefetch = 0 : i64, scratch_operands = 0 : i64, tpu.core_type = #tpu.core_type<tc>, window_params = [{transform_indices = @transform_0, window_bounds = array<i64: 8, 128>}, {transform_indices = @transform_1, window_bounds = array<i64: 8, 256>}]} {
    %c0 = arith.constant 0 : index
    %c0_0 = arith.constant 0 : index
    %0 = vector.load %arg1[%c0, %c0_0] : memref<8x128xf32, #tpu.memory_space<vmem>>, vector<8x128xf32>
    %c0_1 = arith.constant 0 : index
    %c0_2 = arith.constant 0 : index
    %1 = vector.load %arg2[%c0_1, %c0_2] : memref<8x256xf32, #tpu.memory_space<vmem>>, vector<8x128xf32>
    tpu.vector_store %arg2[%c0_1, %c0_2], %0 {strides = array<i32>} : memref<8x256xf32, #tpu.memory_space<vmem>>, vector<8x128xf32>,
    %c0_3 = arith.constant 0 : index
    %c128 = arith.constant 128 : index
    %2 = vector.load %arg2[%c0_3, %c128] : memref<8x256xf32, #tpu.memory_space<vmem>>, vector<8x128xf32>
    tpu.vector_store %arg2[%c0_3, %c128], %0 {strides = array<i32>} : memref<8x256xf32, #tpu.memory_space<vmem>>, vector<8x128xf32>,
    return
  }
  func.func @transform_0(%arg0: i32) -> (i32, i32) {
    %c0_i32 = arith.constant 0 : i32
    %c0_i32_0 = arith.constant 0 : i32
    return %arg0, %c0_i32 : i32, i32
  }
  func.func @transform_1(%arg0: i32) -> (i32, i32) {
    %c0_i32 = arith.constant 0 : i32
    %c0_i32_0 = arith.constant 0 : i32
    return %arg0, %c0_i32 : i32, i32
  }
}

</mosaic_0001>

<llo_original>
// kernel: tpu_custom_call.1
$region0: #{tpu_custom_call.1}
  #allocation0 [shape = 'u32[]', space=smem, size = 0x4, offset = 0x4, fixed_abs, tag = 'smem constant byte address 0x4 - core index']
  #allocation1 [shape = 'u32[144,128]{1,0:T(1,128)}', space=vmem, size = 0x12000, scoped, tag = 'internal scratch']
  %s0 = inlined_call_operand.hbm [shape: f32[8,128], index: 0, kind: input, shape index: {}]
  %s1 = inlined_call_operand.hbm [shape: f32[8,256], index: 1, kind: output, shape index: {}]
  %s2 = sld [smem:[#allocation0]]
  $region18: #{tpu_custom_call.1} parent=0
    _
  %s4 = ssub.s32 1, %s2
  %s5 = scalar_select 0, %s4, %s2
  $region1: #{tpu_custom_call.1} parent=0
    #allocation2 [shape = 'u8[4096]{0}', space=vmem, size = 0x1000, scoped, tag = 'input window, operand 0, single buffered']
    #allocation3 [shape = 's32[1]{0}', space=sflag, size = 0x4, scoped, tag = 'scoped memory for tpu_custom_call.1']
    #allocation4 [shape = 's32[1]{0}', space=sflag, size = 0x4, scoped, tag = 'scoped memory for tpu_custom_call.1']
    #allocation5 [shape = 'u8[8192]{0}', space=vmem, size = 0x2000, scoped, tag = 'output window, operand 0, single buffered']
    %6 = vsyncpa [#allocation3], 0
    %7 = vsyncpa [#allocation4], 0
    // Predicated region
    $region2: #{tpu_custom_call.1} parent=1 // pred_check
      _
    $region3: #{tpu_custom_call.1} parent=1 // pred_check_branch
      %9 = sbr.rel (0) target = $region5
    $region4: #{tpu_custom_call.1} parent=1 // pred_region
      %s11 = ssub.s32 128, 128
      %12 = vsyncadd [#allocation3], %s11
      %s14 = sshll.u32 [#allocation2], 4
      %s15 = int_to_ptr.vmem [resolvable:$true] %s14
      %17 = dma.hbm_to_vmem [thread:$0]  %s0, 128, %s15, [#allocation3]
    $region5: #{tpu_custom_call.1} parent=1 // pred_fallthru
      _
    // Predicated region
    $region6: #{tpu_custom_call.1} parent=1 // pred_check
      _
    $region7: #{tpu_custom_call.1} parent=1 // pred_check_branch
      %19 = sbr.rel (0) target = $region9
    $region8: #{tpu_custom_call.1} parent=1 // pred_region
      %20 = dma.done [#allocation3], 128
    $region9: #{tpu_custom_call.1} parent=1 // pred_fallthru
      _
    %v21 = vld [vmem:[#allocation2] sm:$0xff]
    %22 = vst [vmem:[#allocation5] sm:$0xff] %v21
    %23 = vst [vmem:[#allocation5 + $0x8] sm:$0xff] %v21
    // Predicated region
    $region10: #{tpu_custom_call.1} parent=1 // pred_check
      _
    $region11: #{tpu_custom_call.1} parent=1 // pred_check_branch
      %25 = sbr.rel (0) target = $region13
    $region12: #{tpu_custom_call.1} parent=1 // pred_region
      %s27 = ssub.s32 256, 256
      %28 = vsyncadd [#allocation4], %s27
      %s30 = sshll.u32 [#allocation5], 4
      %s31 = int_to_ptr.vmem [resolvable:$true] %s30
      %33 = dma.vmem_to_hbm [thread:$0]  %s31, 256, %s1, [#allocation4]
    $region13: #{tpu_custom_call.1} parent=1 // pred_fallthru
      _
    // Predicated region
    $region14: #{tpu_custom_call.1} parent=1 // pred_check
      _
    $region15: #{tpu_custom_call.1} parent=1 // pred_check_branch
      %35 = sbr.rel (0) target = $region17
    $region16: #{tpu_custom_call.1} parent=1 // pred_region
      %36 = dma.done [#allocation4], 256
    $region17: #{tpu_custom_call.1} parent=1 // pred_fallthru
      _
    %37 = vsyncpa [#allocation3], 1
    %38 = vsyncpa [#allocation4], 1

</llo_original>
